<compile_context>
chip_gen: v5e
topology: v5e:2x2
jax: 0.10.0
libtpu: 0.0.40
codegen_flags: <defaults>
</compile_context>

<pallas_src>
import functools

import numpy as np
import jax
import jax.numpy as jnp
from jax.experimental import pallas as pl
from jax.experimental.pallas import tpu as pltpu


def _round_up(n, m):
    return (n + m - 1) // m * m


def _cdiv(a, b):
    return -(-a // b)


def _choose_batch_tile(B, cap=2048):
    """Multiple of 16, <= cap, and >= 2 grid steps whenever B allows it."""
    b16 = _round_up(B, 16)
    n_tiles = max(2, _cdiv(b16, cap))        # want >=2 steps for megacore
    tile = _round_up(_cdiv(b16, n_tiles), 16)
    return max(16, min(tile, cap))


def _resident_spec(arr):
    """Constant-index (weight/bias) operand: full-array block, single-buffered."""
    try:
        return pl.BlockSpec(arr.shape, lambda i: (0, 0),
                            pipeline_mode=pl.Buffered(1))
    except TypeError:  # older jax without pipeline_mode kwarg
        return pl.BlockSpec(arr.shape, lambda i: (0, 0))


def vae_decoder_kernel(x_ref,
                       w0_ref, b0_ref,
                       w1_ref, b1_ref,
                       w2_ref, b2_ref,
                       wo_ref, bo_ref,
                       out_ref):
    """Fused MLP forward for one (batch_tile, latent_dim) tile.

    Matmuls hit the MXU with bf16 operands / f32 accumulation; bias-add and
    ReLU run on the VPU in f32. x arrives f32 and is cast to bf16 in-kernel
    (no extra HBM pass, no padded reads).
    """
    h = x_ref[...].astype(jnp.bfloat16)            # (bt, latent_dim)

    # Hidden layer 0: Linear + ReLU
    h = jnp.dot(h, w0_ref[...], preferred_element_type=jnp.float32)
    h = jnp.maximum(h + b0_ref[...], 0.0).astype(jnp.bfloat16)

    # Hidden layer 1: Linear + ReLU
    h = jnp.dot(h, w1_ref[...], preferred_element_type=jnp.float32)
    h = jnp.maximum(h + b1_ref[...], 0.0).astype(jnp.bfloat16)

    # Hidden layer 2: Linear + ReLU
    h = jnp.dot(h, w2_ref[...], preferred_element_type=jnp.float32)
    h = jnp.maximum(h + b2_ref[...], 0.0).astype(jnp.bfloat16)

    # Output layer: Linear (no activation)
    y = jnp.dot(h, wo_ref[...], preferred_element_type=jnp.float32)
    out_ref[...] = (y + bo_ref[...]).astype(out_ref.dtype)


def prepare_params(params):
    """One-time weight prep: bf16 weights, f32 (1, out) biases.

    Call once and reuse; keeps per-forward-call HLO free of pad/cast passes.
    """
    prep = {}
    for name in ("fc0", "fc1", "fc2", "out"):
        w, b = params[name]
        prep[name] = (jnp.asarray(w, jnp.bfloat16),
                      jnp.asarray(b, jnp.float32).reshape(1, -1))
    return prep


def vae_decoder_forward(x, prepared, *, batch_tile=None, out_dtype=jnp.float32):
    """Run the fused decoder.

    x: (B, latent_dim) float32
    prepared: output of prepare_params() (bf16 weights stored (in, out),
              f32 biases stored (1, out)).
    returns: (B, data_dim) in out_dtype (default float32).
    """
    B, latent_dim = x.shape
    w0, b0 = prepared["fc0"]
    w1, b1 = prepared["fc1"]
    w2, b2 = prepared["fc2"]
    wo, bo = prepared["out"]
    W = w0.shape[1]
    data_dim = wo.shape[1]

    # ---- batch tiling (16-row aligned, >=2 grid steps when possible) ----
    if batch_tile is None:
        batch_tile = _choose_batch_tile(B)
    assert batch_tile % 16 == 0, "batch_tile must be a multiple of 16 (bf16 sublanes)"
    B_pad = _round_up(B, batch_tile)
    grid = (B_pad // batch_tile,)

    x_p = x if B_pad == B else jnp.pad(x, ((0, B_pad - B), (0, 0)))

    # ---- cost / VMEM hints ----
    out_itemsize = np.dtype(out_dtype).itemsize
    flops = 2 * B_pad * (latent_dim * W + 2 * W * W + W * data_dim)
    weight_bytes = (latent_dim * W + 2 * W * W + W * data_dim) * 2 \
        + (3 * W + data_dim) * 4
    bytes_accessed = (
        B_pad * latent_dim * 4          # x (f32, unpadded lanes)
        + weight_bytes                  # resident weights + biases
        + B_pad * data_dim * out_itemsize  # output (no lane padding)
    )
    act_tile_bytes = batch_tile * (latent_dim * 4 + data_dim * out_itemsize)
    interm_bytes = 4 * batch_tile * W * 4          # a few f32 intermediates
    vmem_need = weight_bytes + 2 * act_tile_bytes + interm_bytes
    vmem_limit = int(min(max(4 * vmem_need, 4 << 20), 48 << 20))

    out = pl.pallas_call(
        vae_decoder_kernel,
        out_shape=jax.ShapeDtypeStruct((B_pad, data_dim), out_dtype),
        grid_spec=pltpu.PrefetchScalarGridSpec(
            num_scalar_prefetch=0,
            grid=grid,
            in_specs=[
                # x tile: last dim == full array dim (legal even if <128)
                pl.BlockSpec((batch_tile, latent_dim), lambda i: (i, 0)),
                _resident_spec(w0), _resident_spec(b0),
                _resident_spec(w1), _resident_spec(b1),
                _resident_spec(w2), _resident_spec(b2),
                _resident_spec(wo), _resident_spec(bo),
            ],
            # output tile: true data_dim last dim -> no 8x padded writeback
            out_specs=pl.BlockSpec((batch_tile, data_dim), lambda i: (i, 0)),
        ),
        compiler_params=pltpu.CompilerParams(
            dimension_semantics=("parallel",),
            vmem_limit_bytes=vmem_limit,
        ),
        cost_estimate=pl.CostEstimate(
            flops=flops, transcendentals=0, bytes_accessed=bytes_accessed),
    )(x_p, w0, b0, w1, b1, w2, b2, wo, bo)

    return out if B_pad == B else out[:B]


def init_params(key, latent_dim, data_dim, W=128, D=4):
    """Deterministic init matching the PyTorch module's layer shapes.

    D-1 hidden Linear layers (current_dim -> W) + output Linear (W -> data_dim).
    Uses uniform(-1/sqrt(fan_in), 1/sqrt(fan_in)) like torch.nn.Linear default.
    """
    assert D == 4, "kernel is written (fused) for D=4 (3 hidden layers + output)"
    params = {}
    current = latent_dim
    for name in ["fc0", "fc1", "fc2"]:
        key, kw, kb = jax.random.split(key, 3)
        bound = 1.0 / jnp.sqrt(current)
        w = jax.random.uniform(kw, (current, W), jnp.float32, -bound, bound)
        b = jax.random.uniform(kb, (1, W), jnp.float32, -bound, bound)
        params[name] = (w, b)
        current = W
    key, kw, kb = jax.random.split(key, 3)
    bound = 1.0 / jnp.sqrt(current)
    wo = jax.random.uniform(kw, (current, data_dim), jnp.float32, -bound, bound)
    bo = jax.random.uniform(kb, (1, data_dim), jnp.float32, -bound, bound)
    params["out"] = (wo, bo)
    return params


def reference_forward(x, params):
    """Pure-JAX f32 reference matching the PyTorch forward."""
    h = x
    for name in ["fc0", "fc1", "fc2"]:
        w, b = params[name]
        h = jnp.maximum(h @ w + b, 0.0)
    wo, bo = params["out"]
    return h @ wo + bo


if __name__ == "__main__":
    # Small shapes consistent with the module: batch=30 (exercises batch
    # padding + a 2-step parallel grid), latent_dim=8, hidden width W=128,
    # D=4 layers, data_dim=16.
    B, latent_dim, W, data_dim = 30, 8, 128, 16

    key = jax.random.PRNGKey(0)
    key, kx = jax.random.split(key)
    x = jax.random.normal(kx, (B, latent_dim), dtype=jnp.float32)

    params = init_params(key, latent_dim, data_dim, W=W, D=4)
    prepared = prepare_params(params)      # one-time weight prep (hoisted)

    fwd = jax.jit(functools.partial(vae_decoder_forward))
    y = fwd(x, prepared)                   # auto batch_tile=16 -> grid=(2,)
    y = jax.block_until_ready(y)

    y_ref = reference_forward(x, params)
    assert y.shape == (B, data_dim)
    # bf16 matmul operands with f32 accumulation -> looser tolerance than f32.
    max_err = float(jnp.max(jnp.abs(y - y_ref)))
    assert jnp.allclose(y, y_ref, atol=5e-2, rtol=5e-2), f"mismatch vs reference: {max_err}"

    print("KERNEL_OK")
</pallas_src>

<mosaic_0001>
module attributes {stable_mosaic.version = 11 : i64} {
  func.func @vae_decoder_kernel(%arg0: i32, %arg1: memref<16x8xf32, #tpu.memory_space<vmem>>, %arg2: memref<8x128xbf16, #tpu.memory_space<vmem>>, %arg3: memref<1x128xf32, #tpu.memory_space<vmem>>, %arg4: memref<128x128xbf16, #tpu.memory_space<vmem>>, %arg5: memref<1x128xf32, #tpu.memory_space<vmem>>, %arg6: memref<128x128xbf16, #tpu.memory_space<vmem>>, %arg7: memref<1x128xf32, #tpu.memory_space<vmem>>, %arg8: memref<128x16xbf16, #tpu.memory_space<vmem>>, %arg9: memref<1x16xf32, #tpu.memory_space<vmem>>, %arg10: memref<16x16xf32, #tpu.memory_space<vmem>>) attributes {dimension_semantics = [#tpu.dimension_semantics<parallel>], iteration_bounds = array<i64: 2>, scalar_prefetch = 0 : i64, scratch_operands = 0 : i64, tpu.core_type = #tpu.core_type<tc>, window_params = [{transform_indices = @transform_0, window_bounds = array<i64: 16, 8>}, {pipeline_mode = #tpu.pipeline_mode<synchronous>, transform_indices = @transform_1, window_bounds = array<i64: 8, 128>}, {pipeline_mode = #tpu.pipeline_mode<synchronous>, transform_indices = @transform_2, window_bounds = array<i64: 1, 128>}, {pipeline_mode = #tpu.pipeline_mode<synchronous>, transform_indices = @transform_3, window_bounds = array<i64: 128, 128>}, {pipeline_mode = #tpu.pipeline_mode<synchronous>, transform_indices = @transform_4, window_bounds = array<i64: 1, 128>}, {pipeline_mode = #tpu.pipeline_mode<synchronous>, transform_indices = @transform_5, window_bounds = array<i64: 128, 128>}, {pipeline_mode = #tpu.pipeline_mode<synchronous>, transform_indices = @transform_6, window_bounds = array<i64: 1, 128>}, {pipeline_mode = #tpu.pipeline_mode<synchronous>, transform_indices = @transform_7, window_bounds = array<i64: 128, 16>}, {pipeline_mode = #tpu.pipeline_mode<synchronous>, transform_indices = @transform_8, window_bounds = array<i64: 1, 16>}, {transform_indices = @transform_9, window_bounds = array<i64: 16, 16>}]} {
    %c0 = arith.constant 0 : index
    %c0_0 = arith.constant 0 : index
    %0 = vector.load %arg1[%c0, %c0_0] : memref<16x8xf32, #tpu.memory_space<vmem>>, vector<16x8xf32>
    %1 = arith.truncf %0 : vector<16x8xf32> to vector<16x8xbf16>
    %c0_1 = arith.constant 0 : index
    %c0_2 = arith.constant 0 : index
    %2 = vector.load %arg2[%c0_1, %c0_2] : memref<8x128xbf16, #tpu.memory_space<vmem>>, vector<8x128xbf16>
    %cst = arith.constant dense<0.000000e+00> : vector<16x128xf32>
    %3 = tpu.matmul %1, %2, %cst {dimension_numbers = #tpu.dot_dimension_numbers<[1], [0], [0], [1], [0, 0, 1, 1], [], []>} : vector<16x8xbf16>, vector<8x128xbf16>, vector<16x128xf32> -> vector<16x128xf32>
    %c0_3 = arith.constant 0 : index
    %c0_4 = arith.constant 0 : index
    %4 = vector.load %arg3[%c0_3, %c0_4] : memref<1x128xf32, #tpu.memory_space<vmem>>, vector<1x128xf32>
    %5 = vector.broadcast %4 : vector<1x128xf32> to vector<16x128xf32>
    %6 = arith.addf %3, %5 : vector<16x128xf32>
    %cst_5 = arith.constant 0.000000e+00 : f32
    %7 = vector.broadcast %cst_5 : f32 to vector<16x128xf32>
    %8 = arith.maximumf %6, %7 : vector<16x128xf32>
    %9 = arith.truncf %8 : vector<16x128xf32> to vector<16x128xbf16>
    %c0_6 = arith.constant 0 : index
    %c0_7 = arith.constant 0 : index
    %10 = vector.load %arg4[%c0_6, %c0_7] : memref<128x128xbf16, #tpu.memory_space<vmem>>, vector<128x128xbf16>
    %cst_8 = arith.constant dense<0.000000e+00> : vector<16x128xf32>
    %11 = tpu.matmul %9, %10, %cst_8 {dimension_numbers = #tpu.dot_dimension_numbers<[1], [0], [0], [1], [0, 0, 1, 1], [], []>} : vector<16x128xbf16>, vector<128x128xbf16>, vector<16x128xf32> -> vector<16x128xf32>
    %c0_9 = arith.constant 0 : index
    %c0_10 = arith.constant 0 : index
    %12 = vector.load %arg5[%c0_9, %c0_10] : memref<1x128xf32, #tpu.memory_space<vmem>>, vector<1x128xf32>
    %13 = vector.broadcast %12 : vector<1x128xf32> to vector<16x128xf32>
    %14 = arith.addf %11, %13 : vector<16x128xf32>
    %cst_11 = arith.constant 0.000000e+00 : f32
    %15 = vector.broadcast %cst_11 : f32 to vector<16x128xf32>
    %16 = arith.maximumf %14, %15 : vector<16x128xf32>
    %17 = arith.truncf %16 : vector<16x128xf32> to vector<16x128xbf16>
    %c0_12 = arith.constant 0 : index
    %c0_13 = arith.constant 0 : index
    %18 = vector.load %arg6[%c0_12, %c0_13] : memref<128x128xbf16, #tpu.memory_space<vmem>>, vector<128x128xbf16>
    %cst_14 = arith.constant dense<0.000000e+00> : vector<16x128xf32>
    %19 = tpu.matmul %17, %18, %cst_14 {dimension_numbers = #tpu.dot_dimension_numbers<[1], [0], [0], [1], [0, 0, 1, 1], [], []>} : vector<16x128xbf16>, vector<128x128xbf16>, vector<16x128xf32> -> vector<16x128xf32>
    %c0_15 = arith.constant 0 : index
    %c0_16 = arith.constant 0 : index
    %20 = vector.load %arg7[%c0_15, %c0_16] : memref<1x128xf32, #tpu.memory_space<vmem>>, vector<1x128xf32>
    %21 = vector.broadcast %20 : vector<1x128xf32> to vector<16x128xf32>
    %22 = arith.addf %19, %21 : vector<16x128xf32>
    %cst_17 = arith.constant 0.000000e+00 : f32
    %23 = vector.broadcast %cst_17 : f32 to vector<16x128xf32>
    %24 = arith.maximumf %22, %23 : vector<16x128xf32>
    %25 = arith.truncf %24 : vector<16x128xf32> to vector<16x128xbf16>
    %c0_18 = arith.constant 0 : index
    %c0_19 = arith.constant 0 : index
    %26 = vector.load %arg8[%c0_18, %c0_19] : memref<128x16xbf16, #tpu.memory_space<vmem>>, vector<128x16xbf16>
    %cst_20 = arith.constant dense<0.000000e+00> : vector<16x16xf32>
    %27 = tpu.matmul %25, %26, %cst_20 {dimension_numbers = #tpu.dot_dimension_numbers<[1], [0], [0], [1], [0, 0, 1, 1], [], []>} : vector<16x128xbf16>, vector<128x16xbf16>, vector<16x16xf32> -> vector<16x16xf32>
    %c0_21 = arith.constant 0 : index
    %c0_22 = arith.constant 0 : index
    %28 = vector.load %arg9[%c0_21, %c0_22] : memref<1x16xf32, #tpu.memory_space<vmem>>, vector<1x16xf32>
    %29 = vector.broadcast %28 : vector<1x16xf32> to vector<16x16xf32>
    %30 = arith.addf %27, %29 : vector<16x16xf32>
    %c0_23 = arith.constant 0 : index
    %c0_24 = arith.constant 0 : index
    %31 = vector.load %arg10[%c0_23, %c0_24] : memref<16x16xf32, #tpu.memory_space<vmem>>, vector<16x16xf32>
    tpu.vector_store %arg10[%c0_23, %c0_24], %30 {strides = array<i32>} : memref<16x16xf32, #tpu.memory_space<vmem>>, vector<16x16xf32>,
    return
  }
  func.func @transform_0(%arg0: i32) -> (i32, i32) {
    %c0_i32 = arith.constant 0 : i32
    %c0_i32_0 = arith.constant 0 : i32
    return %arg0, %c0_i32 : i32, i32
  }
  func.func @transform_1(%arg0: i32) -> (i32, i32) {
    %c0_i32 = arith.constant 0 : i32
    %c0_i32_0 = arith.constant 0 : i32
    %c0_i32_1 = arith.constant 0 : i32
    return %c0_i32, %c0_i32_0 : i32, i32
  }
  func.func @transform_2(%arg0: i32) -> (i32, i32) {
    %c0_i32 = arith.constant 0 : i32
    %c0_i32_0 = arith.constant 0 : i32
    %c0_i32_1 = arith.constant 0 : i32
    return %c0_i32, %c0_i32_0 : i32, i32
  }
  func.func @transform_3(%arg0: i32) -> (i32, i32) {
    %c0_i32 = arith.constant 0 : i32
    %c0_i32_0 = arith.constant 0 : i32
    %c0_i32_1 = arith.constant 0 : i32
    return %c0_i32, %c0_i32_0 : i32, i32
  }
  func.func @transform_4(%arg0: i32) -> (i32, i32) {
    %c0_i32 = arith.constant 0 : i32
    %c0_i32_0 = arith.constant 0 : i32
    %c0_i32_1 = arith.constant 0 : i32
    return %c0_i32, %c0_i32_0 : i32, i32
  }
  func.func @transform_5(%arg0: i32) -> (i32, i32) {
    %c0_i32 = arith.constant 0 : i32
    %c0_i32_0 = arith.constant 0 : i32
    %c0_i32_1 = arith.constant 0 : i32
    return %c0_i32, %c0_i32_0 : i32, i32
  }
  func.func @transform_6(%arg0: i32) -> (i32, i32) {
    %c0_i32 = arith.constant 0 : i32
    %c0_i32_0 = arith.constant 0 : i32
    %c0_i32_1 = arith.constant 0 : i32
    return %c0_i32, %c0_i32_0 : i32, i32
  }
  func.func @transform_7(%arg0: i32) -> (i32, i32) {
    %c0_i32 = arith.constant 0 : i32
    %c0_i32_0 = arith.constant 0 : i32
    %c0_i32_1 = arith.constant 0 : i32
    return %c0_i32, %c0_i32_0 : i32, i32
  }
  func.func @transform_8(%arg0: i32) -> (i32, i32) {
    %c0_i32 = arith.constant 0 : i32
    %c0_i32_0 = arith.constant 0 : i32
    %c0_i32_1 = arith.constant 0 : i32
    return %c0_i32, %c0_i32_0 : i32, i32
  }
  func.func @transform_9(%arg0: i32) -> (i32, i32) {
    %c0_i32 = arith.constant 0 : i32
    %c0_i32_0 = arith.constant 0 : i32
    return %arg0, %c0_i32 : i32, i32
  }
}

</mosaic_0001>

<llo_original>
// kernel: vae_decoder_forward.1
$region0: #{vae_decoder_forward.1}
  #allocation0 [shape = 'u32[]', space=smem, size = 0x4, offset = 0x4, fixed_abs, tag = 'smem constant byte address 0x4 - core index']
  #allocation1 [shape = 'u32[72,128]{1,0:T(1,128)}', space=vmem, size = 0x9000, scoped, tag = 'internal scratch']
  %s0 = inlined_call_operand.vmem [shape: f32[32,8], index: 0, kind: input, shape index: {}]
  %s1 = inlined_call_operand.vmem [shape: bf16[8,128], index: 1, kind: input, shape index: {}]
  %s2 = inlined_call_operand.vmem [shape: f32[1,128], index: 2, kind: input, shape index: {}]
  %s3 = inlined_call_operand.vmem [shape: bf16[128,128], index: 3, kind: input, shape index: {}]
  %s4 = inlined_call_operand.vmem [shape: f32[1,128], index: 4, kind: input, shape index: {}]
  %s5 = inlined_call_operand.vmem [shape: bf16[128,128], index: 5, kind: input, shape index: {}]
  %s6 = inlined_call_operand.vmem [shape: f32[1,128], index: 6, kind: input, shape index: {}]
  %s7 = inlined_call_operand.vmem [shape: bf16[128,16], index: 7, kind: input, shape index: {}]
  %s8 = inlined_call_operand.vmem [shape: f32[1,16], index: 8, kind: input, shape index: {}]
  %s9 = inlined_call_operand.vmem [shape: f32[32,16], index: 9, kind: output, shape index: {}]
  %s10 = sld [smem:[#allocation0]]
  $region69: #{vae_decoder_forward.1} parent=0
    _
  %s12 = ssub.s32 1, %s10
  %s13 = scalar_select 0, %s12, %s10
  loop: start=0, step=1, limit=4
  $region2: #{vae_decoder_forward.1} parent=0 // loop_pre_header
    _
  $region3: #{vae_decoder_forward.1} parent=0 // loop_header
    %s15 = sphi 0, %s19
    %p16 = scmp.ge.s32.totalorder %s15, 4
    %s25 = sphi 0, %s27
    %s28 = sphi 0, %s25
    %s29 = sphi 0, %s28
    %s45 = sphi 0, %s29
    %s49 = sphi 0, %s49
    %s51 = sphi 0, %s49
    %s52 = sphi 0, %s51
    %s66 = sphi 0, %s52
    %s70 = sphi 0, %s70
    %s72 = sphi 0, %s70
    %s73 = sphi 0, %s72
    %s87 = sphi 0, %s73
    %s91 = sphi 0, %s91
    %s93 = sphi 0, %s91
    %s94 = sphi 0, %s93
    %s108 = sphi 0, %s94
    %s112 = sphi 0, %s112
    %s114 = sphi 0, %s112
    %s115 = sphi 0, %s114
    %s129 = sphi 0, %s115
    %s133 = sphi 0, %s133
    %s135 = sphi 0, %s133
    %s136 = sphi 0, %s135
    %s150 = sphi 0, %s136
    %s154 = sphi 0, %s154
    %s156 = sphi 0, %s154
    %s157 = sphi 0, %s156
    %s171 = sphi 0, %s157
    %s175 = sphi 0, %s175
    %s177 = sphi 0, %s175
    %s178 = sphi 0, %s177
    %s192 = sphi 0, %s178
    %s196 = sphi 0, %s196
    %s198 = sphi 0, %s196
    %s199 = sphi 0, %s198
    %s213 = sphi 0, %s199
    %s219 = sphi 0, %s221
    %s222 = sphi 0, %s219
    %s223 = sphi 0, %s222
    %s239 = sphi 0, %s223
  $region4: #{vae_decoder_forward.1} parent=0 // loop_header_branch
    %18 = sbr.rel (%p16) target = $region8
  $region5: #{vae_decoder_forward.1} parent=0 // loop_body
    %s20 = ssub.s32 %s15, 1
    %s21 = ssub.s32 %s15, 2
    %s22 = sadd.s32 %s15, 1
    %s23 = ssub.s32 %s15, %s22
    %p24 = scmp.eq.s32.totalorder %s23, 0
    %s26 = sadd.s32 %s25, 1
    %s27 = scalar_select %p24, %s25, %s26
    %p30 = pneg %p24
    %p31 = scmp.eq.s32.totalorder %s15, 1
    %p32 = por %p30, %p31
    %p33 = scmp.ne.s32.totalorder %s25, %s28
    %p34 = scmp.eq.s32.totalorder %s15, 0
    %p35 = por %p33, %p34
    %p36 = scmp.ne.s32.totalorder %s25, %s28
    %p37 = scmp.eq.s32.totalorder %s20, 1
    %p38 = por %p36, %p37
    %p39 = scmp.ne.s32.totalorder %s28, %s29
    %p40 = scmp.eq.s32.totalorder %s20, 0
    %p41 = por %p39, %p40
    %p42 = scmp.ne.s32.totalorder %s28, %s29
    %p43 = scmp.eq.s32.totalorder %s21, 1
    %p44 = por %p42, %p43
    %p46 = scmp.ne.s32.totalorder %s29, %s45
    %p47 = scmp.eq.s32.totalorder %s21, 0
    %p48 = por %p46, %p47
    %s50 = sadd.s32 %s49, 1
    %p53 = scmp.eq.s32.totalorder %s15, 1
    %p54 = scmp.ne.s32.totalorder %s49, %s51
    %p55 = scmp.eq.s32.totalorder %s15, 0
    %p56 = por %p54, %p55
    %p57 = scmp.ne.s32.totalorder %s49, %s51
    %p58 = scmp.eq.s32.totalorder %s20, 1
    %p59 = por %p57, %p58
    %p60 = scmp.ne.s32.totalorder %s51, %s52
    %p61 = scmp.eq.s32.totalorder %s20, 0
    %p62 = por %p60, %p61
    %p63 = scmp.ne.s32.totalorder %s51, %s52
    %p64 = scmp.eq.s32.totalorder %s21, 1
    %p65 = por %p63, %p64
    %p67 = scmp.ne.s32.totalorder %s52, %s66
    %p68 = scmp.eq.s32.totalorder %s21, 0
    %p69 = por %p67, %p68
    %s71 = sadd.s32 %s70, 1
    %p74 = scmp.eq.s32.totalorder %s15, 1
    %p75 = scmp.ne.s32.totalorder %s70, %s72
    %p76 = scmp.eq.s32.totalorder %s15, 0
    %p77 = por %p75, %p76
    %p78 = scmp.ne.s32.totalorder %s70, %s72
    %p79 = scmp.eq.s32.totalorder %s20, 1
    %p80 = por %p78, %p79
    %p81 = scmp.ne.s32.totalorder %s72, %s73
    %p82 = scmp.eq.s32.totalorder %s20, 0
    %p83 = por %p81, %p82
    %p84 = scmp.ne.s32.totalorder %s72, %s73
    %p85 = scmp.eq.s32.totalorder %s21, 1
    %p86 = por %p84, %p85
    %p88 = scmp.ne.s32.totalorder %s73, %s87
    %p89 = scmp.eq.s32.totalorder %s21, 0
    %p90 = por %p88, %p89
    %s92 = sadd.s32 %s91, 1
    %p95 = scmp.eq.s32.totalorder %s15, 1
    %p96 = scmp.ne.s32.totalorder %s91, %s93
    %p97 = scmp.eq.s32.totalorder %s15, 0
    %p98 = por %p96, %p97
    %p99 = scmp.ne.s32.totalorder %s91, %s93
    %p100 = scmp.eq.s32.totalorder %s20, 1
    %p101 = por %p99, %p100
    %p102 = scmp.ne.s32.totalorder %s93, %s94
    %p103 = scmp.eq.s32.totalorder %s20, 0
    %p104 = por %p102, %p103
    %p105 = scmp.ne.s32.totalorder %s93, %s94
    %p106 = scmp.eq.s32.totalorder %s21, 1
    %p107 = por %p105, %p106
    %p109 = scmp.ne.s32.totalorder %s94, %s108
    %p110 = scmp.eq.s32.totalorder %s21, 0
    %p111 = por %p109, %p110
    %s113 = sadd.s32 %s112, 1
    %p116 = scmp.eq.s32.totalorder %s15, 1
    %p117 = scmp.ne.s32.totalorder %s112, %s114
    %p118 = scmp.eq.s32.totalorder %s15, 0
    %p119 = por %p117, %p118
    %p120 = scmp.ne.s32.totalorder %s112, %s114
    %p121 = scmp.eq.s32.totalorder %s20, 1
    %p122 = por %p120, %p121
    %p123 = scmp.ne.s32.totalorder %s114, %s115
    %p124 = scmp.eq.s32.totalorder %s20, 0
    %p125 = por %p123, %p124
    %p126 = scmp.ne.s32.totalorder %s114, %s115
    %p127 = scmp.eq.s32.totalorder %s21, 1
    %p128 = por %p126, %p127
    %p130 = scmp.ne.s32.totalorder %s115, %s129
    %p131 = scmp.eq.s32.totalorder %s21, 0
    %p132 = por %p130, %p131
    %s134 = sadd.s32 %s133, 1
    %p137 = scmp.eq.s32.totalorder %s15, 1
    %p138 = scmp.ne.s32.totalorder %s133, %s135
    %p139 = scmp.eq.s32.totalorder %s15, 0
    %p140 = por %p138, %p139
    %p141 = scmp.ne.s32.totalorder %s133, %s135
    %p142 = scmp.eq.s32.totalorder %s20, 1
    %p143 = por %p141, %p142
    %p144 = scmp.ne.s32.totalorder %s135, %s136
    %p145 = scmp.eq.s32.totalorder %s20, 0
    %p146 = por %p144, %p145
    %p147 = scmp.ne.s32.totalorder %s135, %s136
    %p148 = scmp.eq.s32.totalorder %s21, 1
    %p149 = por %p147, %p148
    %p151 = scmp.ne.s32.totalorder %s136, %s150
    %p152 = scmp.eq.s32.totalorder %s21, 0
    %p153 = por %p151, %p152
    %s155 = sadd.s32 %s154, 1
    %p158 = scmp.eq.s32.totalorder %s15, 1
    %p159 = scmp.ne.s32.totalorder %s154, %s156
    %p160 = scmp.eq.s32.totalorder %s15, 0
    %p161 = por %p159, %p160
    %p162 = scmp.ne.s32.totalorder %s154, %s156
    %p163 = scmp.eq.s32.totalorder %s20, 1
    %p164 = por %p162, %p163
    %p165 = scmp.ne.s32.totalorder %s156, %s157
    %p166 = scmp.eq.s32.totalorder %s20, 0
    %p167 = por %p165, %p166
    %p168 = scmp.ne.s32.totalorder %s156, %s157
    %p169 = scmp.eq.s32.totalorder %s21, 1
    %p170 = por %p168, %p169
    %p172 = scmp.ne.s32.totalorder %s157, %s171
    %p173 = scmp.eq.s32.totalorder %s21, 0
    %p174 = por %p172, %p173
    %s176 = sadd.s32 %s175, 1
    %p179 = scmp.eq.s32.totalorder %s15, 1
    %p180 = scmp.ne.s32.totalorder %s175, %s177
    %p181 = scmp.eq.s32.totalorder %s15, 0
    %p182 = por %p180, %p181
    %p183 = scmp.ne.s32.totalorder %s175, %s177
    %p184 = scmp.eq.s32.totalorder %s20, 1
    %p185 = por %p183, %p184
    %p186 = scmp.ne.s32.totalorder %s177, %s178
    %p187 = scmp.eq.s32.totalorder %s20, 0
    %p188 = por %p186, %p187
    %p189 = scmp.ne.s32.totalorder %s177, %s178
    %p190 = scmp.eq.s32.totalorder %s21, 1
    %p191 = por %p189, %p190
    %p193 = scmp.ne.s32.totalorder %s178, %s192
    %p194 = scmp.eq.s32.totalorder %s21, 0
    %p195 = por %p193, %p194
    %s197 = sadd.s32 %s196, 1
    %p200 = scmp.eq.s32.totalorder %s15, 1
    %p201 = scmp.ne.s32.totalorder %s196, %s198
    %p202 = scmp.eq.s32.totalorder %s15, 0
    %p203 = por %p201, %p202
    %p204 = scmp.ne.s32.totalorder %s196, %s198
    %p205 = scmp.eq.s32.totalorder %s20, 1
    %p206 = por %p204, %p205
    %p207 = scmp.ne.s32.totalorder %s198, %s199
    %p208 = scmp.eq.s32.totalorder %s20, 0
    %p209 = por %p207, %p208
    %p210 = scmp.ne.s32.totalorder %s198, %s199
    %p211 = scmp.eq.s32.totalorder %s21, 1
    %p212 = por %p210, %p211
    %p214 = scmp.ne.s32.totalorder %s199, %s213
    %p215 = scmp.eq.s32.totalorder %s21, 0
    %p216 = por %p214, %p215
    %s217 = ssub.s32 %s15, %s22
    %p218 = scmp.eq.s32.totalorder %s217, 0
    %s220 = sadd.s32 %s219, 1
    %s221 = scalar_select %p218, %s219, %s220
    %p224 = pneg %p218
    %p225 = scmp.eq.s32.totalorder %s15, 1
    %p226 = por %p224, %p225
    %p227 = scmp.ne.s32.totalorder %s219, %s222
    %p228 = scmp.eq.s32.totalorder %s15, 0
    %p229 = por %p227, %p228
    %p230 = scmp.ne.s32.totalorder %s219, %s222
    %p231 = scmp.eq.s32.totalorder %s20, 1
    %p232 = por %p230, %p231
    %p233 = scmp.ne.s32.totalorder %s222, %s223
    %p234 = scmp.eq.s32.totalorder %s20, 0
    %p235 = por %p233, %p234
    %p236 = scmp.ne.s32.totalorder %s222, %s223
    %p237 = scmp.eq.s32.totalorder %s21, 1
    %p238 = por %p236, %p237
    %p240 = scmp.ne.s32.totalorder %s223, %s239
    %p241 = scmp.eq.s32.totalorder %s21, 0
    %p242 = por %p240, %p241
    %p243 = scmp.le.s32.totalorder 1, %s15
    %p244 = scmp.lt.s32.totalorder %s15, 3
    %p245 = pnand %p243, %p244
    %p246 = pneg %p245
    // Predicated region
    $region9: #{vae_decoder_forward.1} parent=5 // pred_check
      _
    $region10: #{vae_decoder_forward.1} parent=5 // pred_check_branch
      %248 = sbr.rel (%p245) target = $region12
    $region11: #{vae_decoder_forward.1} parent=5 // pred_region
      %s249 = ssub.s32 %s15, 1
      // Predicated region
      $region13: #{vae_decoder_forward.1} parent=11 // pred_check
        %p250 = pneg %p62
      $region14: #{vae_decoder_forward.1} parent=11 // pred_check_branch
        %252 = sbr.rel (%p250) target = $region16
      $region15: #{vae_decoder_forward.1} parent=11 // pred_region
        _
      $region16: #{vae_decoder_forward.1} parent=11 // pred_fallthru
        _
      // Predicated region
      $region17: #{vae_decoder_forward.1} parent=11 // pred_check
        %p253 = pneg %p83
      $region18: #{vae_decoder_forward.1} parent=11 // pred_check_branch
        %255 = sbr.rel (%p253) target = $region20
      $region19: #{vae_decoder_forward.1} parent=11 // pred_region
        _
      $region20: #{vae_decoder_forward.1} parent=11 // pred_fallthru
        _
      // Predicated region
      $region21: #{vae_decoder_forward.1} parent=11 // pred_check
        %p256 = pneg %p104
      $region22: #{vae_decoder_forward.1} parent=11 // pred_check_branch
        %258 = sbr.rel (%p256) target = $region24
      $region23: #{vae_decoder_forward.1} parent=11 // pred_region
        _
      $region24: #{vae_decoder_forward.1} parent=11 // pred_fallthru
        _
      // Predicated region
      $region25: #{vae_decoder_forward.1} parent=11 // pred_check
        %p259 = pneg %p125
      $region26: #{vae_decoder_forward.1} parent=11 // pred_check_branch
        %261 = sbr.rel (%p259) target = $region28
      $region27: #{vae_decoder_forward.1} parent=11 // pred_region
        _
      $region28: #{vae_decoder_forward.1} parent=11 // pred_fallthru
        _
      // Predicated region
      $region29: #{vae_decoder_forward.1} parent=11 // pred_check
        %p262 = pneg %p146
      $region30: #{vae_decoder_forward.1} parent=11 // pred_check_branch
        %264 = sbr.rel (%p262) target = $region32
      $region31: #{vae_decoder_forward.1} parent=11 // pred_region
        _
      $region32: #{vae_decoder_forward.1} parent=11 // pred_fallthru
        _
      // Predicated region
      $region33: #{vae_decoder_forward.1} parent=11 // pred_check
        %p265 = pneg %p167
      $region34: #{vae_decoder_forward.1} parent=11 // pred_check_branch
        %267 = sbr.rel (%p265) target = $region36
      $region35: #{vae_decoder_forward.1} parent=11 // pred_region
        _
      $region36: #{vae_decoder_forward.1} parent=11 // pred_fallthru
        _
      // Predicated region
      $region37: #{vae_decoder_forward.1} parent=11 // pred_check
        %p268 = pneg %p188
      $region38: #{vae_decoder_forward.1} parent=11 // pred_check_branch
        %270 = sbr.rel (%p268) target = $region40
      $region39: #{vae_decoder_forward.1} parent=11 // pred_region
        _
      $region40: #{vae_decoder_forward.1} parent=11 // pred_fallthru
        _
      // Predicated region
      $region41: #{vae_decoder_forward.1} parent=11 // pred_check
        %p271 = pneg %p209
      $region42: #{vae_decoder_forward.1} parent=11 // pred_check_branch
        %273 = sbr.rel (%p271) target = $region44
      $region43: #{vae_decoder_forward.1} parent=11 // pred_region
        _
      $region44: #{vae_decoder_forward.1} parent=11 // pred_fallthru
        _
    $region12: #{vae_decoder_forward.1} parent=5 // pred_fallthru
      _
    %p274 = scmp.lt.s32.totalorder %s15, 2
    // Predicated region
    $region45: #{vae_decoder_forward.1} parent=5 // pred_check
      %p275 = pneg %p274
    $region46: #{vae_decoder_forward.1} parent=5 // pred_check_branch
      %277 = sbr.rel (%p275) target = $region48
    $region47: #{vae_decoder_forward.1} parent=5 // pred_region
      // Predicated region
      $region49: #{vae_decoder_forward.1} parent=47 // pred_check
        %p278 = pneg %p35
      $region50: #{vae_decoder_forward.1} parent=47 // pred_check_branch
        %280 = sbr.rel (%p278) target = $region52
      $region51: #{vae_decoder_forward.1} parent=47 // pred_region
        %s281 = smul.u32 2, %s15
        %p282 = scmp.lt.s32.totalorder %s281, 3
        %s283 = scalar_select %p282, %s281, 3
        %s284 = smul.addr %s283, 8
        %s285 = scalar_lea.vmem %s0, %s284
        %s286 = smul.u32 2, %s15
      $region52: #{vae_decoder_forward.1} parent=47 // pred_fallthru
        _
    $region48: #{vae_decoder_forward.1} parent=5 // pred_fallthru
      _
    %p287 = scmp.le.s32.totalorder 1, %s15
    %p288 = scmp.lt.s32.totalorder %s15, 3
    %p289 = pnand %p287, %p288
    %p290 = pneg %p289
    // Predicated region
    $region53: #{vae_decoder_forward.1} parent=5 // pred_check
      _
    $region54: #{vae_decoder_forward.1} parent=5 // pred_check_branch
      %292 = sbr.rel (%p289) target = $region56
    $region55: #{vae_decoder_forward.1} parent=5 // pred_region
      %s293 = ssub.s32 %s15, 1
      %s294 = smul.u32 2, %s20
      %p295 = scmp.lt.s32.totalorder %s294, 3
      %s296 = scalar_select %p295, %s294, 3
      %s297 = smul.addr %s296, 8
      %s298 = scalar_lea.vmem %s0, %s297
      %p299 = pneg %p41
      %p300 = pneg %p38
      %p301 = pneg %p62
      %p302 = pneg %p59
      %p303 = pneg %p83
      %p304 = pneg %p80
      %p305 = pneg %p104
      %p306 = pneg %p101
      %p307 = pneg %p125
      %p308 = pneg %p122
      %p309 = pneg %p146
      %p310 = pneg %p143
      %p311 = pneg %p167
      %p312 = pneg %p164
      %p313 = pneg %p188
      %p314 = pneg %p185
      %p315 = pneg %p209
      %p316 = pneg %p206
      %p317 = pneg %p235
      %p318 = pneg %p232
      %s319 = smul.u32 2, %s20
      %p320 = scmp.lt.s32.totalorder %s319, 3
      %s321 = scalar_select %p320, %s319, 3
      %s322 = smul.addr %s321, 8
      %s323 = scalar_lea.vmem %s9, %s322
      %s324 = smul.u32 2, %s20
      %p325 = scmp.lt.s32.totalorder %s324, 3
      %s326 = scalar_select %p325, %s324, 3
      %s327 = smul.addr %s326, 8
      %s328 = scalar_lea.vmem %s0, %s327
      %s329 = smul.u32 2, %s20
      %s330 = smul.u32 2, %s20
      %p331 = scmp.lt.s32.totalorder %s330, 3
      %s332 = scalar_select %p331, %s330, 3
      %s333 = smul.addr %s332, 8
      %s334 = scalar_lea.vmem %s9, %s333
      %s335 = smul.u32 2, %s20
      %v337 = vld [vmem:[%s328] sm:$0xff]
      %v338 = vld [vmem:[%s328 + $0x8] sm:$0xff]
      %v339 = vpack.c.bf16 %v338, %v337
      %v340 = vld [vmem:[%s1] sm:$0xf]
      %v341 = vld [vmem:[%s2] sm:$0x1]
      %v343 = vperm.slane %v341, 0
      %vm345 = vcmask 64512
      %v347 = vsel %vm345, %v339, 0
      %vm349 = vcmask 1043456
      %v351 = vsel %vm349, %v340, 0
      %353 = vmatpush.bf16.msra.mxu0 0
      %354 = vmatpush.bf16.msra.mxu0 0
      %355 = vmatpush.bf16.msra.mxu0 0
      %356 = vmatpush.bf16.msra.mxu0 0
      %357 = vmatpush.bf16.msra.mxu0 0
      %358 = vmatpush.bf16.msra.mxu0 0
      %359 = vmatpush.bf16.msra.mxu0 0
      %360 = vmatpush.bf16.msra.mxu0 %v351
      %361 = vmatmul.bf16.gmra.mxu0 %v347
      %v362 = vpop.f32.mrf.mxu0
      %v363 = vadd.f32 %v343, %v362
      %v364 = vpop.f32.mrf.mxu0
      %v365 = vadd.f32 %v343, %v364
      %366 = vdwg.mxu0
      %v367 = vmax.f32 %v363, 0.0
      %v368 = vmax.f32 %v365, 0.0
      %v369 = vpack.c.bf16 %v368, %v367
      %v370 = vld [vmem:[%s3] sm:$0xf]
      %v371 = vld [vmem:[%s3 + $0x4] sm:$0xf]
      %v372 = vld [vmem:[%s3 + $0x8] sm:$0xf]
      %v373 = vld [vmem:[%s3 + $0xc] sm:$0xf]
      %v374 = vld [vmem:[%s3 + $0x10] sm:$0xf]
      %v375 = vld [vmem:[%s3 + $0x14] sm:$0xf]
      %v376 = vld [vmem:[%s3 + $0x18] sm:$0xf]
      %v377 = vld [vmem:[%s3 + $0x1c] sm:$0xf]
      %v378 = vld [vmem:[%s3 + $0x20] sm:$0xf]
      %v379 = vld [vmem:[%s3 + $0x24] sm:$0xf]
      %v380 = vld [vmem:[%s3 + $0x28] sm:$0xf]
      %v381 = vld [vmem:[%s3 + $0x2c] sm:$0xf]
      %v382 = vld [vmem:[%s3 + $0x30] sm:$0xf]
      %v383 = vld [vmem:[%s3 + $0x34] sm:$0xf]
      %v384 = vld [vmem:[%s3 + $0x38] sm:$0xf]
      %v385 = vld [vmem:[%s3 + $0x3c] sm:$0xf]
      %v386 = vld [vmem:[%s4] sm:$0x1]
      %v388 = vperm.slane %v386, 0
      %v406 = vunpack.c.l.b16 %v370
      %v407 = vunpack.c.l.b16 %v371
      %v408 = vunpack.c.l.b16 %v372
      %v409 = vunpack.c.l.b16 %v373
      %v410 = vunpack.c.l.b16 %v374
      %v411 = vunpack.c.l.b16 %v375
      %v412 = vunpack.c.l.b16 %v376
      %v413 = vunpack.c.l.b16 %v377
      %v414 = vunpack.c.l.b16 %v378
      %v415 = vunpack.c.l.b16 %v379
      %v416 = vunpack.c.l.b16 %v380
      %v417 = vunpack.c.l.b16 %v381
      %v418 = vunpack.c.l.b16 %v382
      %v419 = vunpack.c.l.b16 %v383
      %v420 = vunpack.c.l.b16 %v384
      %v421 = vunpack.c.l.b16 %v385
      %v422 = vpack.c.b16 %v407, %v406
      %v423 = vpack.c.b16 %v409, %v408
      %v424 = vpack.c.b16 %v411, %v410
      %v425 = vpack.c.b16 %v413, %v412
      %v426 = vpack.c.b16 %v415, %v414
      %v427 = vpack.c.b16 %v417, %v416
      %v428 = vpack.c.b16 %v419, %v418
      %v429 = vpack.c.b16 %v421, %v420
      %438 = vmatpush.bf16.msra.mxu0 %v429
      %439 = vmatpush.bf16.msra.mxu0 %v428
      %440 = vmatpush.bf16.msra.mxu0 %v427
      %441 = vmatpush.bf16.msra.mxu0 %v426
      %442 = vmatpush.bf16.msra.mxu0 %v425
      %443 = vmatpush.bf16.msra.mxu0 %v424
      %444 = vmatpush.bf16.msra.mxu0 %v423
      %445 = vmatpush.bf16.msra.mxu0 %v422
      %446 = vmatmul.bf16.gmra.mxu0 %v369
      %v447 = vpop.f32.mrf.mxu0
      %v448 = vadd.f32 %v388, %v447
      %v449 = vpop.f32.mrf.mxu0
      %v450 = vadd.f32 %v388, %v449
      %451 = vdwg.mxu0
      %v452 = vmax.f32 %v448, 0.0
      %v453 = vmax.f32 %v450, 0.0
      %v454 = vpack.c.bf16 %v453, %v452
      %v455 = vld [vmem:[%s5] sm:$0xf]
      %v456 = vld [vmem:[%s5 + $0x4] sm:$0xf]
      %v457 = vld [vmem:[%s5 + $0x8] sm:$0xf]
      %v458 = vld [vmem:[%s5 + $0xc] sm:$0xf]
      %v459 = vld [vmem:[%s5 + $0x10] sm:$0xf]
      %v460 = vld [vmem:[%s5 + $0x14] sm:$0xf]
      %v461 = vld [vmem:[%s5 + $0x18] sm:$0xf]
      %v462 = vld [vmem:[%s5 + $0x1c] sm:$0xf]
      %v463 = vld [vmem:[%s5 + $0x20] sm:$0xf]
      %v464 = vld [vmem:[%s5 + $0x24] sm:$0xf]
      %v465 = vld [vmem:[%s5 + $0x28] sm:$0xf]
      %v466 = vld [vmem:[%s5 + $0x2c] sm:$0xf]
      %v467 = vld [vmem:[%s5 + $0x30] sm:$0xf]
      %v468 = vld [vmem:[%s5 + $0x34] sm:$0xf]
      %v469 = vld [vmem:[%s5 + $0x38] sm:$0xf]
      %v470 = vld [vmem:[%s5 + $0x3c] sm:$0xf]
      %v471 = vld [vmem:[%s6] sm:$0x1]
      %v473 = vperm.slane %v471, 0
      %v491 = vunpack.c.l.b16 %v455
      %v492 = vunpack.c.l.b16 %v456
      %v493 = vunpack.c.l.b16 %v457
      %v494 = vunpack.c.l.b16 %v458
      %v495 = vunpack.c.l.b16 %v459
      %v496 = vunpack.c.l.b16 %v460
      %v497 = vunpack.c.l.b16 %v461
      %v498 = vunpack.c.l.b16 %v462
      %v499 = vunpack.c.l.b16 %v463
      %v500 = vunpack.c.l.b16 %v464
      %v501 = vunpack.c.l.b16 %v465
      %v502 = vunpack.c.l.b16 %v466
      %v503 = vunpack.c.l.b16 %v467
      %v504 = vunpack.c.l.b16 %v468
      %v505 = vunpack.c.l.b16 %v469
      %v506 = vunpack.c.l.b16 %v470
      %v507 = vpack.c.b16 %v492, %v491
      %v508 = vpack.c.b16 %v494, %v493
      %v509 = vpack.c.b16 %v496, %v495
      %v510 = vpack.c.b16 %v498, %v497
      %v511 = vpack.c.b16 %v500, %v499
      %v512 = vpack.c.b16 %v502, %v501
      %v513 = vpack.c.b16 %v504, %v503
      %v514 = vpack.c.b16 %v506, %v505
      %523 = vmatpush.bf16.msra.mxu0 %v514
      %524 = vmatpush.bf16.msra.mxu0 %v513
      %525 = vmatpush.bf16.msra.mxu0 %v512
      %526 = vmatpush.bf16.msra.mxu0 %v511
      %527 = vmatpush.bf16.msra.mxu0 %v510
      %528 = vmatpush.bf16.msra.mxu0 %v509
      %529 = vmatpush.bf16.msra.mxu0 %v508
      %530 = vmatpush.bf16.msra.mxu0 %v507
      %531 = vmatmul.bf16.gmra.mxu0 %v454
      %v532 = vpop.f32.mrf.mxu0
      %v533 = vadd.f32 %v473, %v532
      %v534 = vpop.f32.mrf.mxu0
      %v535 = vadd.f32 %v473, %v534
      %536 = vdwg.mxu0
      %v537 = vmax.f32 %v533, 0.0
      %v538 = vmax.f32 %v535, 0.0
      %v539 = vpack.c.bf16 %v538, %v537
      %v540 = vld [vmem:[%s7] sm:$0xf]
      %v541 = vld [vmem:[%s7 + $0x4] sm:$0xf]
      %v542 = vld [vmem:[%s7 + $0x8] sm:$0xf]
      %v543 = vld [vmem:[%s7 + $0xc] sm:$0xf]
      %v544 = vld [vmem:[%s7 + $0x10] sm:$0xf]
      %v545 = vld [vmem:[%s7 + $0x14] sm:$0xf]
      %v546 = vld [vmem:[%s7 + $0x18] sm:$0xf]
      %v547 = vld [vmem:[%s7 + $0x1c] sm:$0xf]
      %v548 = vld [vmem:[%s7 + $0x20] sm:$0xf]
      %v549 = vld [vmem:[%s7 + $0x24] sm:$0xf]
      %v550 = vld [vmem:[%s7 + $0x28] sm:$0xf]
      %v551 = vld [vmem:[%s7 + $0x2c] sm:$0xf]
      %v552 = vld [vmem:[%s7 + $0x30] sm:$0xf]
      %v553 = vld [vmem:[%s7 + $0x34] sm:$0xf]
      %v554 = vld [vmem:[%s7 + $0x38] sm:$0xf]
      %v555 = vld [vmem:[%s7 + $0x3c] sm:$0xf]
      %v556 = vld [vmem:[%s8] sm:$0x1]
      %v558 = vperm.slane %v556, 0
      %v576 = vunpack.c.l.b16 %v540
      %v577 = vunpack.c.l.b16 %v541
      %v578 = vunpack.c.l.b16 %v542
      %v579 = vunpack.c.l.b16 %v543
      %v580 = vunpack.c.l.b16 %v544
      %v581 = vunpack.c.l.b16 %v545
      %v582 = vunpack.c.l.b16 %v546
      %v583 = vunpack.c.l.b16 %v547
      %v584 = vunpack.c.l.b16 %v548
      %v585 = vunpack.c.l.b16 %v549
      %v586 = vunpack.c.l.b16 %v550
      %v587 = vunpack.c.l.b16 %v551
      %v588 = vunpack.c.l.b16 %v552
      %v589 = vunpack.c.l.b16 %v553
      %v590 = vunpack.c.l.b16 %v554
      %v591 = vunpack.c.l.b16 %v555
      %v592 = vpack.c.b16 %v577, %v576
      %v593 = vpack.c.b16 %v579, %v578
      %v594 = vpack.c.b16 %v581, %v580
      %v595 = vpack.c.b16 %v583, %v582
      %v596 = vpack.c.b16 %v585, %v584
      %v597 = vpack.c.b16 %v587, %v586
      %v598 = vpack.c.b16 %v589, %v588
      %v599 = vpack.c.b16 %v591, %v590
      %608 = vmatpush.bf16.msra.mxu0 %v599
      %609 = vmatpush.bf16.msra.mxu0 %v598
      %610 = vmatpush.bf16.msra.mxu0 %v597
      %611 = vmatpush.bf16.msra.mxu0 %v596
      %612 = vmatpush.bf16.msra.mxu0 %v595
      %613 = vmatpush.bf16.msra.mxu0 %v594
      %614 = vmatpush.bf16.msra.mxu0 %v593
      %615 = vmatpush.bf16.msra.mxu0 %v592
      %616 = vmatmul.bf16.gmra.mxu0 %v539
      %v617 = vpop.f32.mrf.mxu0
      %v618 = vadd.f32 %v558, %v617
      %v619 = vpop.f32.mrf.mxu0
      %v620 = vadd.f32 %v558, %v619
      %621 = vdwg.mxu0
      %vm622 = vcmask 130048
      %623 = vst.msk [vmem:[%s334] sm:$0xff] %vm622, %v618
      %624 = vst.msk [vmem:[%s334 + $0x8] sm:$0xff] %vm622, %v620
      %s625 = smul.u32 2, %s20
      %p626 = scmp.lt.s32.totalorder %s625, 3
      %s627 = scalar_select %p626, %s625, 3
      %s628 = smul.addr %s627, 8
      %s629 = scalar_lea.vmem %s9, %s628
      // Predicated region
      $region57: #{vae_decoder_forward.1} parent=55 // pred_check
        %p630 = pneg %p232
      $region58: #{vae_decoder_forward.1} parent=55 // pred_check_branch
        %632 = sbr.rel (%p630) target = $region60
      $region59: #{vae_decoder_forward.1} parent=55 // pred_region
        %s633 = smul.u32 2, %s20
      $region60: #{vae_decoder_forward.1} parent=55 // pred_fallthru
        _
    $region56: #{vae_decoder_forward.1} parent=5 // pred_fallthru
      _
    %p634 = scmp.le.s32.totalorder 2, %s15
    // Predicated region
    $region61: #{vae_decoder_forward.1} parent=5 // pred_check
      %p635 = pneg %p634
    $region62: #{vae_decoder_forward.1} parent=5 // pred_check_branch
      %637 = sbr.rel (%p635) target = $region64
    $region63: #{vae_decoder_forward.1} parent=5 // pred_region
      %s638 = ssub.s32 %s15, 2
      // Predicated region
      $region65: #{vae_decoder_forward.1} parent=63 // pred_check
        %p639 = pneg %p238
      $region66: #{vae_decoder_forward.1} parent=63 // pred_check_branch
        %641 = sbr.rel (%p639) target = $region68
      $region67: #{vae_decoder_forward.1} parent=63 // pred_region
        %s642 = smul.u32 2, %s21
        %p643 = scmp.lt.s32.totalorder %s642, 3
        %s644 = scalar_select %p643, %s642, 3
        %s645 = smul.addr %s644, 8
        %s646 = scalar_lea.vmem %s9, %s645
      $region68: #{vae_decoder_forward.1} parent=63 // pred_fallthru
        _
    $region64: #{vae_decoder_forward.1} parent=5 // pred_fallthru
      _
  $region6: #{vae_decoder_forward.1} parent=0 // loop_footer
    %s19 = sadd.s32 1, %s15
  $region7: #{vae_decoder_forward.1} parent=0 // loop_footer_branch
    %14 = sbr.rel target = $region3
  $region8: #{vae_decoder_forward.1} parent=0 // loop_exit
    _

</llo_original>
